<compile_context>
chip_gen: v7x
topology: tpu7x:2x2x1
jax: 0.10.0
libtpu: 0.0.40
codegen_flags: <defaults>
</compile_context>

<pallas_src>
import jax
import jax.numpy as jnp
from jax import lax
from jax.experimental import pallas as pl
from jax.experimental.pallas import tpu as pltpu


def _attend(x_tile, q_tile, keys_t, values, q_start, out_dtype):
    """Core attention for one (batch-block, query-tile).

    x_tile : (Bb, Tq, D)   raw inputs for these query rows (for the output concat)
    q_tile : (Bb, Tq, Ks)  query projection (1/sqrt(Ks) already folded into the weight)
    keys_t : (Bb, Ks, T)   key projection, pre-transposed (hoisted out of the tile loop)
    values : (Bb, T,  Vs)  value projection
    q_start: global row offset of this query tile (for the causal mask)
    """
    block_t = q_tile.shape[1]
    t_total = keys_t.shape[2]

    # Q @ K^T in canonical MXU form (LHS contracts its minor dim, RHS its sublane dim),
    # native-dtype operands, f32 accumulation.
    logits = jnp.einsum("bqk,bks->bqs", q_tile, keys_t,
                        preferred_element_type=jnp.float32)            # (Bb, Tq, T)

    # Strict upper-triangular causal mask over *global* positions (torch triu_(1), -1e9).
    # Row/col iotas stay (Tq,1)/(1,T) and broadcast in the compare — no full int32 planes.
    rows = q_start + lax.broadcasted_iota(jnp.int32, (block_t, 1), 0)
    cols = lax.broadcasted_iota(jnp.int32, (1, t_total), 1)
    logits = jnp.where((cols > rows)[None, :, :], jnp.float32(-1e9), logits)

    # Numerically-stable softmax over keys (torch dim=2). Normalization uses the EUP
    # approximate reciprocal instead of a VALU divide: ~1e-3-level deviation from an
    # exact softmax (tolerances in the tests below account for this).
    m = jnp.max(logits, axis=-1, keepdims=True)
    e = jnp.exp(logits - m)
    denom = jnp.sum(e, axis=-1, keepdims=True)
    probs = e * pl.reciprocal(denom, approx=True)

    # P @ V with MXU-native operand dtype (probs cast to the value dtype), f32 accum.
    read = jnp.einsum("bqs,bsv->bqv", probs.astype(values.dtype), values,
                      preferred_element_type=jnp.float32)              # (Bb, Tq, Vs)

    # torch.cat([inputs, read], dim=2): build the whole (Bb, Tq, D+Vs) tile once so the
    # caller issues a single store (no split store at a non-128 lane offset).
    return jnp.concatenate([x_tile.astype(out_dtype), read.astype(out_dtype)], axis=-1)


def _fused_attention_kernel(x_ref, w_ref, b_ref, out_ref, kt_ref, q_ref, v_ref):
    """Fused-projection variant.  grid = (batch blocks, query tiles).

    NOTE: the query-tile axis MUST be innermost and "arbitrary": the K^T/Q/V scratches
    are written at qt == 0 and reused by the later query tiles of the same batch block.
    Reordering the grid or marking the q axis parallel would silently produce garbage.
    """
    qt = pl.program_id(1)
    bb, t_total, d = x_ref.shape
    block_t = out_ref.shape[1]
    ks = q_ref.shape[2]
    vs = v_ref.shape[2]

    # Fused K|Q|V projection, once per batch block (first query tile): one MXU matmul
    # against the pre-concatenated (D, 2*Ks+Vs) weight; the 1/sqrt(Ks) softmax scale is
    # folded into the query columns. Scratches are stored in the input's native dtype
    # (half the VMEM traffic for bf16); accumulation is f32.
    @pl.when(qt == 0)
    def _():
        xm = x_ref[...].reshape(bb * t_total, d)
        proj = jnp.dot(xm, w_ref[...], preferred_element_type=jnp.float32)
        proj = (proj + b_ref[...].astype(jnp.float32)).reshape(bb, t_total, 2 * ks + vs)
        # Keys are stored pre-transposed so the per-tile Q@K^T needs no per-tile
        # transpose; the transpose runs on the f32 accumulator, cast on store.
        kt_ref[...] = jnp.swapaxes(proj[:, :, :ks], 1, 2).astype(kt_ref.dtype)
        q_ref[...] = proj[:, :, ks:2 * ks].astype(q_ref.dtype)
        v_ref[...] = proj[:, :, 2 * ks:].astype(v_ref.dtype)

    q_start = pl.multiple_of(qt * block_t, block_t)
    if block_t == t_total:            # single query tile: plain full-ref loads
        x_tile = x_ref[...]
        q_tile = q_ref[...]
    else:
        x_tile = x_ref[:, pl.ds(q_start, block_t), :]
        q_tile = q_ref[:, pl.ds(q_start, block_t), :]

    out_ref[...] = _attend(x_tile, q_tile, kt_ref[...], v_ref[...], q_start,
                           out_ref.dtype)


def _hoisted_attention_kernel(x_ref, q_ref, kt_ref, v_ref, out_ref):
    """Projection-free variant used when the batch axis has a single block: there is no
    cross-tile scratch dependency, so BOTH grid axes are "parallel" (keeps both v7x
    TensorCores busy for small-batch inference)."""
    block_t = out_ref.shape[1]
    q_start = pl.multiple_of(pl.program_id(1) * block_t, block_t)
    out_ref[...] = _attend(x_ref[...], q_ref[...], kt_ref[...], v_ref[...], q_start,
                           out_ref.dtype)


def _largest_divisor(n, cap, align=1):
    """Largest d <= cap with n % d == 0 and d % align == 0; falls back to n."""
    if n <= cap:
        return n
    for cand in range(cap, 0, -1):
        if n % cand == 0 and cand % align == 0:
            return cand
    return n


def _vmem_capacity_bytes():
    """Per-core VMEM capacity (128 MiB on v5e/v6e, 64 MiB on v7x); safe fallback."""
    try:
        cap = int(pltpu.get_tpu_info().vmem_capacity_bytes)
        if cap > 0:
            return cap
    except Exception:
        pass
    return 64 * 1024 * 1024


def attention_block(x, wk, bk, wq, bq, wv, bv, key_size, *, block_b=None, block_t=None):
    """x: (B, T, D); W*: (D, out) (transposed vs torch Linear); b*: (1, out).

    Returns (B, T, D + value_size) = concat([x, causal_attention_read], axis=2),
    matching AttentionBlock.forward.
    """
    B, T, D = x.shape
    Ks = wk.shape[1]
    Vs = wv.shape[1]
    F = 2 * Ks + Vs

    # Fold the 1/sqrt(key_size) softmax scale into the query projection and fuse the
    # three projections into one (D, F) weight / (1, F) bias. The scale fold is done in
    # f32 and rounded once to the weight dtype (for bf16 weights this differs from torch
    # -- which scales the f32 logits -- only at the bf16 rounding level).
    scale = jnp.float32(1.0 / (key_size ** 0.5))
    wq_s = (wq.astype(jnp.float32) * scale).astype(wq.dtype)
    bq_s = (bq.astype(jnp.float32) * scale).astype(bq.dtype)
    w_fused = jnp.concatenate([wk, wq_s, wv], axis=1)
    b_fused = jnp.concatenate([bk, bq_s, bv], axis=1)

    # ---- generation-aware tile sizes / VMEM budget -----------------------------------
    itemsize = jnp.dtype(x.dtype).itemsize
    sub_align = 8 * max(1, 4 // itemsize)            # f32: 8, bf16: 16, int8/fp8: 32
    vmem_cap = _vmem_capacity_bytes()
    vmem_limit = min(max(32 * 1024 * 1024, int(0.75 * vmem_cap)), 128 * 1024 * 1024)
    t_cap = 128 if vmem_cap <= 96 * 1024 * 1024 else 256   # smaller tiles on 64MiB v7x

    if block_t is None:
        block_t = _largest_divisor(T, t_cap, align=sub_align)
    if block_b is None:
        # Batch several short sequences per grid step (amortize ~0.35us/step), but keep
        # >= 2 blocks on the parallel batch axis when possible (megacore sharding).
        cap = max(1, min(8, 512 // T)) if T % sub_align == 0 else 1
        block_b = _largest_divisor(B, cap)
        if block_b > 1 and B // block_b < 2:
            block_b = _largest_divisor(B, max(1, block_b // 2))

    assert B % block_b == 0 and T % block_t == 0, "block sizes must divide (B, T)"
    grid = (B // block_b, T // block_t)
    grid_b, grid_t = grid

    attn_flops = 2 * B * T * T * (Ks + Vs)
    proj_flops = 2 * B * T * D * F
    out_bytes = B * T * (D + Vs) * itemsize

    # TODO(synk): for very long sequences a flash-style key-tiled loop (online softmax,
    # skipping fully-masked key blocks above the diagonal) would avoid materializing the
    # (Tq, T) logits; not needed at SNAIL sequence lengths.

    if grid_b == 1 and grid_t > 1:
        # Single batch block: computing K/Q/V inside the kernel would force the query
        # axis to be sequential just to share the scratch. Hoist the projection to one
        # XLA matmul so both grid axes can be "parallel" (v7x: query tiles shard across
        # the two TensorCores). Costs one HBM round trip of the (B, T, F) projections.
        proj = jnp.dot(x.reshape(B * T, D), w_fused, preferred_element_type=jnp.float32)
        proj = (proj + b_fused.astype(jnp.float32)).reshape(B, T, F)
        keys_t = jnp.swapaxes(proj[:, :, :Ks], 1, 2).astype(x.dtype)   # (B, Ks, T)
        q_all = proj[:, :, Ks:2 * Ks].astype(x.dtype)                  # (B, T, Ks)
        v_all = proj[:, :, 2 * Ks:].astype(x.dtype)                    # (B, T, Vs)

        cost = pl.CostEstimate(
            flops=int(attn_flops),
            transcendentals=int(B * T * T),
            bytes_accessed=int((x.size + q_all.size + keys_t.size + v_all.size)
                               * itemsize + out_bytes))

        return pl.pallas_call(
            _hoisted_attention_kernel,
            out_shape=jax.ShapeDtypeStruct((B, T, D + Vs), x.dtype),
            grid=grid,
            in_specs=[
                pl.BlockSpec((block_b, block_t, D), lambda b, q: (b, q, 0)),
                pl.BlockSpec((block_b, block_t, Ks), lambda b, q: (b, q, 0)),
                pl.BlockSpec((block_b, Ks, T), lambda b, q: (b, 0, 0)),
                pl.BlockSpec((block_b, T, Vs), lambda b, q: (b, 0, 0)),
            ],
            out_specs=pl.BlockSpec((block_b, block_t, D + Vs), lambda b, q: (b, q, 0)),
            compiler_params=pltpu.CompilerParams(
                dimension_semantics=("parallel", "parallel"),
                vmem_limit_bytes=vmem_limit),
            cost_estimate=cost,
        )(x, q_all, keys_t, v_all)

    cost = pl.CostEstimate(
        flops=int(proj_flops + attn_flops),
        transcendentals=int(B * T * T),
        bytes_accessed=int(x.size * itemsize
                           + w_fused.size * jnp.dtype(w_fused.dtype).itemsize
                           + b_fused.size * jnp.dtype(b_fused.dtype).itemsize
                           + out_bytes))

    return pl.pallas_call(
        _fused_attention_kernel,
        out_shape=jax.ShapeDtypeStruct((B, T, D + Vs), x.dtype),
        grid=grid,
        in_specs=[
            # Full sequence per batch block; block index is constant across q, so the
            # x tile is not re-fetched between query tiles.
            pl.BlockSpec((block_b, T, D), lambda b, q: (b, 0, 0)),
            pl.BlockSpec((D, F), lambda b, q: (0, 0)),
            pl.BlockSpec((1, F), lambda b, q: (0, 0)),
        ],
        out_specs=pl.BlockSpec((block_b, block_t, D + Vs), lambda b, q: (b, q, 0)),
        scratch_shapes=[
            pltpu.VMEM((block_b, Ks, T), x.dtype),   # K^T   (filled at qt == 0)
            pltpu.VMEM((block_b, T, Ks), x.dtype),   # Q (scale folded into weight)
            pltpu.VMEM((block_b, T, Vs), x.dtype),   # V
        ],
        compiler_params=pltpu.CompilerParams(
            # q axis stays innermost + "arbitrary" (scratch reuse across query tiles).
            dimension_semantics=("parallel", "arbitrary"),
            vmem_limit_bytes=vmem_limit),
        cost_estimate=cost,
    )(x, w_fused, b_fused)


def _reference(x, wk, bk, wq, bq, wv, bv, key_size):
    keys = x @ wk + bk
    query = x @ wq + bq
    values = x @ wv + bv
    logits = jnp.einsum("btk,bsk->bts", query, keys) / (key_size ** 0.5)
    t = x.shape[1]
    mask = jnp.triu(jnp.ones((t, t), dtype=bool), k=1)
    logits = jnp.where(mask[None], -1e9, logits)
    probs = jax.nn.softmax(logits, axis=2)
    read = jnp.einsum("bts,bsv->btv", probs, values)
    return jnp.concatenate([x, read], axis=2)


if __name__ == "__main__":
    # Small shapes consistent with the module's forward: (batch, seq, hidden).
    B, T, D = 2, 8, 32
    key_size, value_size = 16, 16

    key = jax.random.PRNGKey(0)
    kx, kwk, kbk, kwq, kbq, kwv, kbv = jax.random.split(key, 7)

    x = jax.random.normal(kx, (B, T, D), dtype=jnp.float32)

    # Deterministic synthetic parameters (torch Linear (out, in) -> stored as (in, out)).
    init = 1.0 / (D ** 0.5)
    wk = jax.random.uniform(kwk, (D, key_size), jnp.float32, -init, init)
    bk = jax.random.uniform(kbk, (1, key_size), jnp.float32, -init, init)
    wq = jax.random.uniform(kwq, (D, key_size), jnp.float32, -init, init)
    bq = jax.random.uniform(kbq, (1, key_size), jnp.float32, -init, init)
    wv = jax.random.uniform(kwv, (D, value_size), jnp.float32, -init, init)
    bv = jax.random.uniform(kbv, (1, value_size), jnp.float32, -init, init)

    # 1) fused-projection path, single query tile (grid = (2, 1)), f32.
    out = jax.block_until_ready(attention_block(x, wk, bk, wq, bq, wv, bv, key_size))
    ref = _reference(x, wk, bk, wq, bq, wv, bv, key_size)
    assert out.shape == (B, T, D + value_size)
    # approx reciprocal (EUP) + folded-scale weights introduce ~1e-3-level differences
    assert jnp.allclose(out, ref, atol=2e-3, rtol=2e-3), "fused single-tile mismatch"

    # 2) fused-projection path with multiple query tiles (scratch reuse across tiles).
    B2, T2 = 4, 256
    x2 = jax.random.normal(jax.random.PRNGKey(1), (B2, T2, D), dtype=jnp.float32)
    out2 = jax.block_until_ready(
        attention_block(x2, wk, bk, wq, bq, wv, bv, key_size, block_t=128))
    ref2 = _reference(x2, wk, bk, wq, bq, wv, bv, key_size)
    assert jnp.allclose(out2, ref2, atol=5e-3, rtol=5e-3), "fused multi-tile mismatch"

    # 3) hoisted-projection path (single batch block, both grid axes parallel).
    x3 = jax.random.normal(jax.random.PRNGKey(2), (1, T2, D), dtype=jnp.float32)
    out3 = jax.block_until_ready(
        attention_block(x3, wk, bk, wq, bq, wv, bv, key_size, block_t=128))
    ref3 = _reference(x3, wk, bk, wq, bq, wv, bv, key_size)
    assert jnp.allclose(out3, ref3, atol=5e-3, rtol=5e-3), "hoisted path mismatch"

    # 4) bf16 inputs (bf16 MXU operands / scratches, f32 accumulation).
    xb = x.astype(jnp.bfloat16)
    wkb, bkb = wk.astype(jnp.bfloat16), bk.astype(jnp.bfloat16)
    wqb, bqb = wq.astype(jnp.bfloat16), bq.astype(jnp.bfloat16)
    wvb, bvb = wv.astype(jnp.bfloat16), bv.astype(jnp.bfloat16)
    outb = jax.block_until_ready(
        attention_block(xb, wkb, bkb, wqb, bqb, wvb, bvb, key_size))
    refb = _reference(xb.astype(jnp.float32),
                      wkb.astype(jnp.float32), bkb.astype(jnp.float32),
                      wqb.astype(jnp.float32), bqb.astype(jnp.float32),
                      wvb.astype(jnp.float32), bvb.astype(jnp.float32), key_size)
    assert outb.dtype == jnp.bfloat16
    assert jnp.allclose(outb.astype(jnp.float32), refb, atol=6e-2, rtol=6e-2), \
        "bf16 path mismatch"

    print("KERNEL_OK")
</pallas_src>

<mosaic_0001>
module attributes {stable_mosaic.version = 11 : i64} {
  func.func @_fused_attention_kernel(%arg0: i32, %arg1: i32, %arg2: memref<1x8x32xf32, #tpu.memory_space<vmem>>, %arg3: memref<32x48xf32, #tpu.memory_space<vmem>>, %arg4: memref<1x48xf32, #tpu.memory_space<vmem>>, %arg5: memref<1x8x48xf32, #tpu.memory_space<vmem>>, %arg6: memref<1x16x8xf32, #tpu.memory_space<vmem>>, %arg7: memref<1x8x16xf32, #tpu.memory_space<vmem>>, %arg8: memref<1x8x16xf32, #tpu.memory_space<vmem>>) attributes {dimension_semantics = [#tpu.dimension_semantics<parallel>, #tpu.dimension_semantics<arbitrary>], iteration_bounds = array<i64: 2, 1>, scalar_prefetch = 0 : i64, scratch_operands = 3 : i64, tpu.core_type = #tpu.core_type<tc>, window_params = [{transform_indices = @transform_0, window_bounds = array<i64: 1, 8, 32>}, {pipeline_mode = #tpu.pipeline_mode<synchronous>, transform_indices = @transform_1, window_bounds = array<i64: 32, 48>}, {pipeline_mode = #tpu.pipeline_mode<synchronous>, transform_indices = @transform_2, window_bounds = array<i64: 1, 48>}, {transform_indices = @transform_3, window_bounds = array<i64: 1, 8, 48>}]} {
    %c0_i32 = arith.constant 0 : i32
    %0 = arith.cmpi eq, %arg1, %c0_i32 : i32
    %1 = arith.extui %0 : i1 to i32
    %c0_i32_0 = arith.constant 0 : i32
    %2 = arith.cmpi ne, %1, %c0_i32_0 : i32
    scf.if %2 {
      %c0_19 = arith.constant 0 : index
      %c0_20 = arith.constant 0 : index
      %c0_21 = arith.constant 0 : index
      %33 = vector.load %arg2[%c0_19, %c0_20, %c0_21] : memref<1x8x32xf32, #tpu.memory_space<vmem>>, vector<1x8x32xf32>
      %34 = vector.shape_cast %33 : vector<1x8x32xf32> to vector<8x32xf32>
      %c0_22 = arith.constant 0 : index
      %c0_23 = arith.constant 0 : index
      %35 = vector.load %arg3[%c0_22, %c0_23] : memref<32x48xf32, #tpu.memory_space<vmem>>, vector<32x48xf32>
      %cst_24 = arith.constant dense<0.000000e+00> : vector<8x48xf32>
      %36 = tpu.matmul %34, %35, %cst_24 {dimension_numbers = #tpu.dot_dimension_numbers<[1], [0], [0], [1], [0, 0, 1, 1], [], []>} : vector<8x32xf32>, vector<32x48xf32>, vector<8x48xf32> -> vector<8x48xf32>
      %c0_25 = arith.constant 0 : index
      %c0_26 = arith.constant 0 : index
      %37 = vector.load %arg4[%c0_25, %c0_26] : memref<1x48xf32, #tpu.memory_space<vmem>>, vector<1x48xf32>
      %38 = vector.broadcast %37 : vector<1x48xf32> to vector<8x48xf32>
      %39 = arith.addf %36, %38 : vector<8x48xf32>
      %40 = vector.shape_cast %39 : vector<8x48xf32> to vector<1x8x48xf32>
      %41 = vector.extract_strided_slice %40 {offsets = [0, 0, 0], sizes = [1, 8, 16], strides = [1, 1, 1]} : vector<1x8x48xf32> to vector<1x8x16xf32>
      %42 = tpu.transpose %41, [0, 2, 1] : vector<1x8x16xf32> -> vector<1x16x8xf32>
      %c0_27 = arith.constant 0 : index
      %c0_28 = arith.constant 0 : index
      %c0_29 = arith.constant 0 : index
      %43 = vector.load %arg6[%c0_27, %c0_28, %c0_29] : memref<1x16x8xf32, #tpu.memory_space<vmem>>, vector<1x16x8xf32>
      tpu.vector_store %arg6[%c0_27, %c0_28, %c0_29], %42 {strides = array<i32>} : memref<1x16x8xf32, #tpu.memory_space<vmem>>, vector<1x16x8xf32>,
      %44 = vector.extract_strided_slice %40 {offsets = [0, 0, 16], sizes = [1, 8, 16], strides = [1, 1, 1]} : vector<1x8x48xf32> to vector<1x8x16xf32>
      %c0_30 = arith.constant 0 : index
      %c0_31 = arith.constant 0 : index
      %c0_32 = arith.constant 0 : index
      %45 = vector.load %arg7[%c0_30, %c0_31, %c0_32] : memref<1x8x16xf32, #tpu.memory_space<vmem>>, vector<1x8x16xf32>
      tpu.vector_store %arg7[%c0_30, %c0_31, %c0_32], %44 {strides = array<i32>} : memref<1x8x16xf32, #tpu.memory_space<vmem>>, vector<1x8x16xf32>,
      %46 = vector.extract_strided_slice %40 {offsets = [0, 0, 32], sizes = [1, 8, 16], strides = [1, 1, 1]} : vector<1x8x48xf32> to vector<1x8x16xf32>
      %c0_33 = arith.constant 0 : index
      %c0_34 = arith.constant 0 : index
      %c0_35 = arith.constant 0 : index
      %47 = vector.load %arg8[%c0_33, %c0_34, %c0_35] : memref<1x8x16xf32, #tpu.memory_space<vmem>>, vector<1x8x16xf32>
      tpu.vector_store %arg8[%c0_33, %c0_34, %c0_35], %46 {strides = array<i32>} : memref<1x8x16xf32, #tpu.memory_space<vmem>>, vector<1x8x16xf32>,
    } else {
    }
    %c8_i32 = arith.constant 8 : i32
    %3 = arith.muli %arg1, %c8_i32 : i32
    %4 = tpu.assume_multiple %3, 8 : i32
    %c0 = arith.constant 0 : index
    %c0_1 = arith.constant 0 : index
    %c0_2 = arith.constant 0 : index
    %5 = vector.load %arg2[%c0, %c0_1, %c0_2] : memref<1x8x32xf32, #tpu.memory_space<vmem>>, vector<1x8x32xf32>
    %c0_3 = arith.constant 0 : index
    %c0_4 = arith.constant 0 : index
    %c0_5 = arith.constant 0 : index
    %6 = vector.load %arg7[%c0_3, %c0_4, %c0_5] : memref<1x8x16xf32, #tpu.memory_space<vmem>>, vector<1x8x16xf32>
    %c0_6 = arith.constant 0 : index
    %c0_7 = arith.constant 0 : index
    %c0_8 = arith.constant 0 : index
    %7 = vector.load %arg6[%c0_6, %c0_7, %c0_8] : memref<1x16x8xf32, #tpu.memory_space<vmem>>, vector<1x16x8xf32>
    %c0_9 = arith.constant 0 : index
    %c0_10 = arith.constant 0 : index
    %c0_11 = arith.constant 0 : index
    %8 = vector.load %arg8[%c0_9, %c0_10, %c0_11] : memref<1x8x16xf32, #tpu.memory_space<vmem>>, vector<1x8x16xf32>
    "tpu.trace_start"() <{level = 10 : i32, message = "bqk,bks->bqs"}> : () -> ()
    %cst = arith.constant dense<0.000000e+00> : vector<1x8x8xf32>
    %9 = tpu.matmul %6, %7, %cst {dimension_numbers = #tpu.dot_dimension_numbers<[2], [1], [1], [2], [0, 0, 0, 1, 1, 2], [0], [0]>} : vector<1x8x16xf32>, vector<1x16x8xf32>, vector<1x8x8xf32> -> vector<1x8x8xf32>
    "tpu.trace_stop"() : () -> ()
    %10 = tpu.iota {dimensions = array<i32: 0>} : vector<8x1xi32>
    %11 = vector.broadcast %4 : i32 to vector<8x1xi32>
    %12 = arith.addi %11, %10 : vector<8x1xi32>
    %13 = tpu.iota {dimensions = array<i32: 1>} : vector<1x8xi32>
    %14 = vector.broadcast %13 : vector<1x8xi32> to vector<8x8xi32>
    %15 = vector.broadcast %12 : vector<8x1xi32> to vector<8x8xi32>
    %16 = arith.cmpi sgt, %14, %15 : vector<8x8xi32>
    %17 = vector.shape_cast %16 : vector<8x8xi1> to vector<1x8x8xi1>
    %cst_12 = arith.constant -1.000000e+09 : f32
    %18 = vector.broadcast %cst_12 : f32 to vector<1x8x8xf32>
    %19 = arith.select %17, %18, %9 : vector<1x8x8xi1>, vector<1x8x8xf32>
    %cst_13 = arith.constant dense<0xFF800000> : vector<1x8xf32>
    %20 = vector.multi_reduction <maximumf>, %19, %cst_13 [2] : vector<1x8x8xf32> to vector<1x8xf32>
    %21 = vector.shape_cast %20 : vector<1x8xf32> to vector<1x8x1xf32>
    %22 = vector.broadcast %21 : vector<1x8x1xf32> to vector<1x8x8xf32>
    %23 = arith.subf %19, %22 : vector<1x8x8xf32>
    %24 = math.exp %23 : vector<1x8x8xf32>
    %cst_14 = arith.constant dense<0.000000e+00> : vector<1x8xf32>
    %25 = vector.multi_reduction <add>, %24, %cst_14 [2] : vector<1x8x8xf32> to vector<1x8xf32>
    %26 = vector.shape_cast %25 : vector<1x8xf32> to vector<1x8x1xf32>
    %27 = tpu.reciprocal %26 {approx = true} : vector<1x8x1xf32> -> vector<1x8x1xf32>
    %28 = vector.broadcast %27 : vector<1x8x1xf32> to vector<1x8x8xf32>
    %29 = arith.mulf %24, %28 : vector<1x8x8xf32>
    "tpu.trace_start"() <{level = 10 : i32, message = "bqs,bsv->bqv"}> : () -> ()
    %cst_15 = arith.constant dense<0.000000e+00> : vector<1x8x16xf32>
    %30 = tpu.matmul %29, %8, %cst_15 {dimension_numbers = #tpu.dot_dimension_numbers<[2], [1], [1], [2], [0, 0, 0, 1, 1, 2], [0], [0]>} : vector<1x8x8xf32>, vector<1x8x16xf32>, vector<1x8x16xf32> -> vector<1x8x16xf32>
    "tpu.trace_stop"() : () -> ()
    %31 = tpu.concatenate %5, %30 in 2 : vector<1x8x32xf32>, vector<1x8x16xf32> -> vector<1x8x48xf32>
    %c0_16 = arith.constant 0 : index
    %c0_17 = arith.constant 0 : index
    %c0_18 = arith.constant 0 : index
    %32 = vector.load %arg5[%c0_16, %c0_17, %c0_18] : memref<1x8x48xf32, #tpu.memory_space<vmem>>, vector<1x8x48xf32>
    tpu.vector_store %arg5[%c0_16, %c0_17, %c0_18], %31 {strides = array<i32>} : memref<1x8x48xf32, #tpu.memory_space<vmem>>, vector<1x8x48xf32>,
    return
  }
  func.func @transform_0(%arg0: i32, %arg1: i32) -> (i32, i32, i32) {
    %c0_i32 = arith.constant 0 : i32
    %c0_i32_0 = arith.constant 0 : i32
    %c0_i32_1 = arith.constant 0 : i32
    return %arg0, %c0_i32, %c0_i32_0 : i32, i32, i32
  }
  func.func @transform_1(%arg0: i32, %arg1: i32) -> (i32, i32) {
    %c0_i32 = arith.constant 0 : i32
    %c0_i32_0 = arith.constant 0 : i32
    %c0_i32_1 = arith.constant 0 : i32
    return %c0_i32, %c0_i32_0 : i32, i32
  }
  func.func @transform_2(%arg0: i32, %arg1: i32) -> (i32, i32) {
    %c0_i32 = arith.constant 0 : i32
    %c0_i32_0 = arith.constant 0 : i32
    %c0_i32_1 = arith.constant 0 : i32
    return %c0_i32, %c0_i32_0 : i32, i32
  }
  func.func @transform_3(%arg0: i32, %arg1: i32) -> (i32, i32, i32) {
    %c0_i32 = arith.constant 0 : i32
    %c0_i32_0 = arith.constant 0 : i32
    return %arg0, %arg1, %c0_i32 : i32, i32, i32
  }
}

</mosaic_0001>

<llo_original>
// kernel: tpu_custom_call.1
$region0: #{tpu_custom_call.1}
  #allocation0 [shape = 'u32[]', space=smem, size = 0x4, offset = 0x4, fixed_abs, tag = 'smem constant byte address 0x4 - core index']
  #allocation1 [shape = 'u32[144,128]{1,0:T(1,128)}', space=vmem, size = 0x12000, scoped, tag = 'internal scratch']
  #allocation2 [shape = 'f32[1,16,8]{2,1,0:T(8,128)}', space=vmem, size = 0x2000, scoped, tag = 'scratch operand']
  #allocation3 [shape = 'f32[1,8,16]{2,1,0:T(8,128)}', space=vmem, size = 0x1000, scoped, tag = 'scratch operand']
  #allocation4 [shape = 'f32[1,8,16]{2,1,0:T(8,128)}', space=vmem, size = 0x1000, scoped, tag = 'scratch operand']
  %s0 = inlined_call_operand.hbm [shape: f32[2,8,32], index: 0, kind: input, shape index: {}]
  %s1 = inlined_call_operand.hbm [shape: f32[32,48], index: 1, kind: input, shape index: {}]
  %s2 = inlined_call_operand.vmem [shape: f32[1,48], index: 2, kind: input, shape index: {}]
  %s3 = inlined_call_operand.hbm [shape: f32[2,8,48], index: 3, kind: output, shape index: {}]
  %s4 = sld [smem:[#allocation0]]
  $region57: #{tpu_custom_call.1} parent=0
    _
  %s6 = ssub.s32 1, %s4
  %s7 = scalar_select 0, %s6, %s4
  $region1: #{tpu_custom_call.1} parent=0
    #allocation5 [shape = 'u8[8192]{0}', space=vmem, size = 0x2000, scoped, tag = 'input window, operand 0']
    #allocation6 [shape = 's32[2]{0}', space=sflag, size = 0x8, scoped, tag = 'scoped memory for tpu_custom_call.1']
    #allocation7 [shape = 's32[2]{0}', space=sflag, size = 0x8, scoped, tag = 'scoped memory for tpu_custom_call.1']
    #allocation8 [shape = 'u8[16384]{0}', space=vmem, size = 0x4000, scoped, tag = 'input window, operand 1, single buffered']
    #allocation9 [shape = 's32[1]{0}', space=sflag, size = 0x4, scoped, tag = 'scoped memory for tpu_custom_call.1']
    #allocation10 [shape = 'u8[8192]{0}', space=vmem, size = 0x2000, scoped, tag = 'output window, operand 0']
    %8 = vsyncpa [#allocation6], 0
    %s9 = scalar_lea.sflag [#allocation6], 1
    %10 = vsyncpa %s9, 0
    %11 = vsyncpa [#allocation9], 0
    %12 = vsyncpa [#allocation7], 0
    %s13 = scalar_lea.sflag [#allocation7], 1
    %14 = vsyncpa %s13, 0
    loop: start=0, step=1, limit=4
    $region2: #{tpu_custom_call.1} parent=1 // loop_pre_header
      _
    $region3: #{tpu_custom_call.1} parent=1 // loop_header
      %s16 = sphi 0, %s20
      %p17 = scmp.ge.s32.totalorder %s16, 4
      %s23 = sphi 0, %s35
      %s24 = sphi 0, %s31
      %s25 = sphi 0, %s23
      %s26 = sphi 0, %s24
      %s27 = sphi 0, %s25
      %s28 = sphi 0, %s26
      %s38 = sphi 0, %s40
      %s41 = sphi 0, %s38
      %s42 = sphi 0, %s41
      %s58 = sphi 0, %s42
      %s62 = sphi 0, %s62
      %s64 = sphi 0, %s62
      %s65 = sphi 0, %s64
      %s79 = sphi 0, %s65
      %s83 = sphi 0, %s83
      %s85 = sphi 0, %s83
      %s86 = sphi 0, %s85
      %s100 = sphi 0, %s86
      %s108 = sphi 0, %s110
      %s111 = sphi 0, %s108
      %s112 = sphi 0, %s111
      %s128 = sphi 0, %s112
    $region4: #{tpu_custom_call.1} parent=1 // loop_header_branch
      %19 = sbr.rel (%p17) target = $region8
    $region5: #{tpu_custom_call.1} parent=1 // loop_body
      %s21 = ssub.s32 %s16, 1
      %s22 = ssub.s32 %s16, 2
      %s29 = sadd.s32 1, %s24
      %p30 = scmp.ge.s32.totalorder %s29, 1
      %s31 = scalar_select %p30, 0, %s29
      %s32 = sadd.s32 1, %s23
      %s33 = scalar_select %p30, %s32, %s23
      %p34 = scmp.ge.s32.totalorder %s33, 2
      %s35 = scalar_select %p34, 0, %s33
      %s36 = ssub.s32 %s23, %s35
      %p37 = scmp.eq.s32.totalorder %s36, 0
      %s39 = sadd.s32 %s38, 1
      %s40 = scalar_select %p37, %s38, %s39
      %p43 = pneg %p37
      %p44 = scmp.eq.s32.totalorder %s16, 1
      %p45 = por %p43, %p44
      %p46 = scmp.ne.s32.totalorder %s38, %s41
      %p47 = scmp.eq.s32.totalorder %s16, 0
      %p48 = por %p46, %p47
      %p49 = scmp.ne.s32.totalorder %s38, %s41
      %p50 = scmp.eq.s32.totalorder %s21, 1
      %p51 = por %p49, %p50
      %p52 = scmp.ne.s32.totalorder %s41, %s42
      %p53 = scmp.eq.s32.totalorder %s21, 0
      %p54 = por %p52, %p53
      %p55 = scmp.ne.s32.totalorder %s41, %s42
      %p56 = scmp.eq.s32.totalorder %s22, 1
      %p57 = por %p55, %p56
      %p59 = scmp.ne.s32.totalorder %s42, %s58
      %p60 = scmp.eq.s32.totalorder %s22, 0
      %p61 = por %p59, %p60
      %s63 = sadd.s32 %s62, 1
      %p66 = scmp.eq.s32.totalorder %s16, 1
      %p67 = scmp.ne.s32.totalorder %s62, %s64
      %p68 = scmp.eq.s32.totalorder %s16, 0
      %p69 = por %p67, %p68
      %p70 = scmp.ne.s32.totalorder %s62, %s64
      %p71 = scmp.eq.s32.totalorder %s21, 1
      %p72 = por %p70, %p71
      %p73 = scmp.ne.s32.totalorder %s64, %s65
      %p74 = scmp.eq.s32.totalorder %s21, 0
      %p75 = por %p73, %p74
      %p76 = scmp.ne.s32.totalorder %s64, %s65
      %p77 = scmp.eq.s32.totalorder %s22, 1
      %p78 = por %p76, %p77
      %p80 = scmp.ne.s32.totalorder %s65, %s79
      %p81 = scmp.eq.s32.totalorder %s22, 0
      %p82 = por %p80, %p81
      %s84 = sadd.s32 %s83, 1
      %p87 = scmp.eq.s32.totalorder %s16, 1
      %p88 = scmp.ne.s32.totalorder %s83, %s85
      %p89 = scmp.eq.s32.totalorder %s16, 0
      %p90 = por %p88, %p89
      %p91 = scmp.ne.s32.totalorder %s83, %s85
      %p92 = scmp.eq.s32.totalorder %s21, 1
      %p93 = por %p91, %p92
      %p94 = scmp.ne.s32.totalorder %s85, %s86
      %p95 = scmp.eq.s32.totalorder %s21, 0
      %p96 = por %p94, %p95
      %p97 = scmp.ne.s32.totalorder %s85, %s86
      %p98 = scmp.eq.s32.totalorder %s22, 1
      %p99 = por %p97, %p98
      %p101 = scmp.ne.s32.totalorder %s86, %s100
      %p102 = scmp.eq.s32.totalorder %s22, 0
      %p103 = por %p101, %p102
      %s104 = ssub.s32 %s23, %s35
      %s105 = ssub.s32 %s24, %s31
      %s106 = sor.u32 %s104, %s105
      %p107 = scmp.eq.s32.totalorder %s106, 0
      %s109 = sadd.s32 %s108, 1
      %s110 = scalar_select %p107, %s108, %s109
      %p113 = pneg %p107
      %p114 = scmp.eq.s32.totalorder %s16, 1
      %p115 = por %p113, %p114
      %p116 = scmp.ne.s32.totalorder %s108, %s111
      %p117 = scmp.eq.s32.totalorder %s16, 0
      %p118 = por %p116, %p117
      %p119 = scmp.ne.s32.totalorder %s108, %s111
      %p120 = scmp.eq.s32.totalorder %s21, 1
      %p121 = por %p119, %p120
      %p122 = scmp.ne.s32.totalorder %s111, %s112
      %p123 = scmp.eq.s32.totalorder %s21, 0
      %p124 = por %p122, %p123
      %p125 = scmp.ne.s32.totalorder %s111, %s112
      %p126 = scmp.eq.s32.totalorder %s22, 1
      %p127 = por %p125, %p126
      %p129 = scmp.ne.s32.totalorder %s112, %s128
      %p130 = scmp.eq.s32.totalorder %s22, 0
      %p131 = por %p129, %p130
      %p132 = scmp.le.s32.totalorder 1, %s16
      %p133 = scmp.lt.s32.totalorder %s16, 3
      %p134 = pnand %p132, %p133
      %p135 = pneg %p134
      // Predicated region
      $region9: #{tpu_custom_call.1} parent=5 // pred_check
        _
      $region10: #{tpu_custom_call.1} parent=5 // pred_check_branch
        %137 = sbr.rel (%p134) target = $region12
      $region11: #{tpu_custom_call.1} parent=5 // pred_region
        %s138 = ssub.s32 %s16, 1
        // Predicated region
        $region13: #{tpu_custom_call.1} parent=11 // pred_check
          %p139 = pneg %p75
        $region14: #{tpu_custom_call.1} parent=11 // pred_check_branch
          %141 = sbr.rel (%p139) target = $region16
        $region15: #{tpu_custom_call.1} parent=11 // pred_region
          %s143 = ssub.s32 512, 512
          %144 = vsyncadd [#allocation9], %s143
          %s145 = sshll.u32 [#allocation8], 4
          %s146 = int_to_ptr.vmem [resolvable:$true] %s145
          %151 = dma.hbm_to_vmem [thread:$0]  %s1, 512, %s146, [#allocation9], 128, 128, 8
        $region16: #{tpu_custom_call.1} parent=11 // pred_fallthru
          _
        // Predicated region
        $region17: #{tpu_custom_call.1} parent=11 // pred_check
          %p152 = pneg %p96
        $region18: #{tpu_custom_call.1} parent=11 // pred_check_branch
          %154 = sbr.rel (%p152) target = $region20
        $region19: #{tpu_custom_call.1} parent=11 // pred_region
          _
        $region20: #{tpu_custom_call.1} parent=11 // pred_fallthru
          _
      $region12: #{tpu_custom_call.1} parent=5 // pred_fallthru
        _
      %p155 = scmp.lt.s32.totalorder %s16, 2
      // Predicated region
      $region21: #{tpu_custom_call.1} parent=5 // pred_check
        %p156 = pneg %p155
      $region22: #{tpu_custom_call.1} parent=5 // pred_check_branch
        %158 = sbr.rel (%p156) target = $region24
      $region23: #{tpu_custom_call.1} parent=5 // pred_region
        // Predicated region
        $region25: #{tpu_custom_call.1} parent=23 // pred_check
          %p159 = pneg %p48
        $region26: #{tpu_custom_call.1} parent=23 // pred_check_branch
          %161 = sbr.rel (%p159) target = $region28
        $region27: #{tpu_custom_call.1} parent=23 // pred_region
          %s162 = sand.u32 %s38, 1
          %s163 = scalar_lea.sflag [#allocation6], %s162
          %s164 = sand.u32 %s38, 1
          %s165 = smul.addr %s164, 8
          %s166 = scalar_lea.vmem [#allocation5], %s165
          %s168 = ssub.s32 128, 128
          %169 = vsyncadd %s163, %s168
          %s170 = smul.addr %s23, 128
          %s171 = scalar_lea.hbm %s0, %s170
          %s173 = sshll.u32 %s166, 4
          %s174 = int_to_ptr.vmem [resolvable:$true] %s173
          %176 = dma.hbm_to_vmem [thread:$0]  %s171, 128, %s174, %s163
        $region28: #{tpu_custom_call.1} parent=23 // pred_fallthru
          _
      $region24: #{tpu_custom_call.1} parent=5 // pred_fallthru
        _
      %p177 = scmp.le.s32.totalorder 1, %s16
      %p178 = scmp.lt.s32.totalorder %s16, 3
      %p179 = pnand %p177, %p178
      %p180 = pneg %p179
      // Predicated region
      $region29: #{tpu_custom_call.1} parent=5 // pred_check
        _
      $region30: #{tpu_custom_call.1} parent=5 // pred_check_branch
        %182 = sbr.rel (%p179) target = $region32
      $region31: #{tpu_custom_call.1} parent=5 // pred_region
        %s183 = ssub.s32 %s16, 1
        %s184 = sand.u32 %s41, 1
        %s185 = scalar_lea.sflag [#allocation6], %s184
        %s186 = sand.u32 %s41, 1
        %s187 = smul.addr %s186, 8
        %s188 = scalar_lea.vmem [#allocation5], %s187
        // Predicated region
        $region33: #{tpu_custom_call.1} parent=31 // pred_check
          %p189 = pneg %p54
        $region34: #{tpu_custom_call.1} parent=31 // pred_check_branch
          %191 = sbr.rel (%p189) target = $region36
        $region35: #{tpu_custom_call.1} parent=31 // pred_region
          %192 = dma.done %s185, 128
        $region36: #{tpu_custom_call.1} parent=31 // pred_fallthru
          _
        // Predicated region
        $region37: #{tpu_custom_call.1} parent=31 // pred_check
          %p193 = pneg %p75
        $region38: #{tpu_custom_call.1} parent=31 // pred_check_branch
          %195 = sbr.rel (%p193) target = $region40
        $region39: #{tpu_custom_call.1} parent=31 // pred_region
          %196 = dma.done [#allocation9], 512
        $region40: #{tpu_custom_call.1} parent=31 // pred_fallthru
          _
        %s197 = sand.u32 %s41, 1
        %s198 = scalar_lea.sflag [#allocation6], %s197
        %s199 = sand.u32 %s41, 1
        %s200 = smul.addr %s199, 8
        %s201 = scalar_lea.vmem [#allocation5], %s200
        %p202 = pneg %p54
        %p203 = pneg %p51
        %p204 = pneg %p75
        %p205 = pneg %p72
        %p206 = pneg %p96
        %p207 = pneg %p93
        %p208 = pneg %p124
        %p209 = pneg %p121
        %s210 = sand.u32 %s111, 1
        %s211 = scalar_lea.sflag [#allocation7], %s210
        %s212 = sand.u32 %s111, 1
        %s213 = smul.addr %s212, 8
        %s214 = scalar_lea.vmem [#allocation10], %s213
        %p215 = scmp.eq.s32.totalorder %s26, 0
        // Predicated region
        $region41: #{tpu_custom_call.1} parent=31 // pred_check
          %p216 = pneg %p215
        $region42: #{tpu_custom_call.1} parent=31 // pred_check_branch
          %218 = sbr.rel (%p216) target = $region44
        $region43: #{tpu_custom_call.1} parent=31 // pred_region
          %v219 = vld [vmem:[%s188] sm:$0xff]
          %v220 = vld [vmem:[#allocation8] sm:$0xff]
          %v221 = vld [vmem:[#allocation8 + $0x8] sm:$0xff]
          %v222 = vld [vmem:[#allocation8 + $0x10] sm:$0xff]
          %v223 = vld [vmem:[#allocation8 + $0x18] sm:$0xff]
          %v224 = vld [vmem:[%s2] sm:$0x1]
          %v226 = vlaneseq
          %v227 = vshrl.u32 %v226, 7
          %v228 = vsub.s32 0, %v227
          %v229 = vrot.slane %v224, %v228
          %vm231 = vcmask 261120
          %v233 = vsel %vm231, %v219, 0
          %235 = vmatprep.subr.mxu0 0.0
          %236 = vmatpush1.msra.mxu0 %v220
          %237 = vmatprep.subr.mxu0 0.0
          %238 = vmatpush1.msra.mxu0 %v221
          %239 = vmatprep.subr.mxu0 0.0
          %240 = vmatpush1.msra.mxu0 %v222
          %241 = vmatprep.subr.mxu0 0.0
          %242 = vmatpush1.msra.mxu0 %v223
          %243 = vmatprep.subr.mxu0 0.0
          %244 = vmatpush1.msra.mxu0 0.0
          %245 = vmatprep.subr.mxu0 0.0
          %246 = vmatpush1.msra.mxu0 0.0
          %247 = vmatprep.subr.mxu0 0.0
          %248 = vmatpush1.msra.mxu0 0.0
          %249 = vmatprep.subr.mxu0 0.0
          %250 = vmatpush1.msra.mxu0 0.0
          %251 = vmatprep.subr.mxu0 0.0
          %252 = vmatpush1.msra.mxu0 0.0
          %253 = vmatprep.subr.mxu0 0.0
          %254 = vmatpush1.msra.mxu0 0.0
          %255 = vmatprep.subr.mxu0 0.0
          %256 = vmatpush1.msra.mxu0 0.0
          %257 = vmatprep.subr.mxu0 0.0
          %258 = vmatpush1.msra.mxu0 0.0
          %259 = vmatprep.subr.mxu0 0.0
          %260 = vmatpush1.msra.mxu0 0.0
          %261 = vmatprep.subr.mxu0 0.0
          %262 = vmatpush1.msra.mxu0 0.0
          %263 = vmatprep.subr.mxu0 0.0
          %264 = vmatpush1.msra.mxu0 0.0
          %265 = vmatprep.subr.mxu0 0.0
          %266 = vmatpush1.msra.mxu0 0.0
          %267 = vmatprep.subr.mxu0 0.0
          %268 = vmatpush1.msra.mxu0 0.0
          %269 = vmatprep.subr.mxu0 0.0
          %270 = vmatpush1.msra.mxu0 0.0
          %271 = vmatprep.subr.mxu0 0.0
          %272 = vmatpush1.msra.mxu0 0.0
          %273 = vmatprep.subr.mxu0 0.0
          %274 = vmatpush1.msra.mxu0 0.0
          %275 = vmatprep.subr.mxu0 0.0
          %276 = vmatpush1.msra.mxu0 0.0
          %277 = vmatprep.subr.mxu0 0.0
          %278 = vmatpush1.msra.mxu0 0.0
          %279 = vmatprep.subr.mxu0 0.0
          %280 = vmatpush1.msra.mxu0 0.0
          %281 = vmatprep.subr.mxu0 0.0
          %282 = vmatpush1.msra.mxu0 0.0
          %283 = vmatprep.subr.mxu0 0.0
          %284 = vmatpush1.msra.mxu0 0.0
          %285 = vmatprep.subr.mxu0 0.0
          %286 = vmatpush1.msra.mxu0 0.0
          %287 = vmatprep.subr.mxu0 0.0
          %288 = vmatpush1.msra.mxu0 0.0
          %289 = vmatprep.subr.mxu0 0.0
          %290 = vmatpush1.msra.mxu0 0.0
          %291 = vmatprep.subr.mxu0 0.0
          %292 = vmatpush1.msra.mxu0 0.0
          %293 = vmatprep.subr.mxu0 0.0
          %294 = vmatpush1.msra.mxu0 0.0
          %295 = vmatprep.subr.mxu0 0.0
          %296 = vmatpush1.msra.mxu0 0.0
          %297 = vmatprep.subr.mxu0 0.0
          %298 = vmatpush1.msra.mxu0 0.0
          %299 = vmatprep.mubr.f32.mxu0 0.0
          %300 = vmatmul.mubr.f32.gmra.mrb[0].mxu0 %v233
          %v301 = vpop.f32.mrb[0].mxu0
          %v302 = vadd.f32 %v229, %v301
          %v303 = vpop.f32.mrb[0].mxu0
          %304 = vdwg.mxu0
          %305 = vxpose.xlu0.b32.start [1/16] %v302, 128
          %306 = vxpose.xlu0.b32.cont [2/16] 0.0, 128
          %307 = vxpose.xlu0.b32.cont [3/16] 0.0, 128
          %308 = vxpose.xlu0.b32.cont [4/16] 0.0, 128
          %309 = vxpose.xlu0.b32.cont [5/16] 0.0, 128
          %310 = vxpose.xlu0.b32.cont [6/16] 0.0, 128
          %311 = vxpose.xlu0.b32.cont [7/16] 0.0, 128
          %312 = vxpose.xlu0.b32.cont [8/16] 0.0, 128
          %313 = vxpose.xlu0.b32.cont [9/16] 0.0, 128
          %314 = vxpose.xlu0.b32.cont [10/16] 0.0, 128
          %315 = vxpose.xlu0.b32.cont [11/16] 0.0, 128
          %316 = vxpose.xlu0.b32.cont [12/16] 0.0, 128
          %317 = vxpose.xlu0.b32.cont [13/16] 0.0, 128
          %318 = vxpose.xlu0.b32.cont [14/16] 0.0, 128
          %319 = vxpose.xlu0.b32.cont [15/16] 0.0, 128
          %320 = vxpose.xlu0.b32.end [16/16] 0.0, 128
          %v321 = vpop.trf.xlu0
          %v322 = vpop.trf.xlu0
          %v323 = vpop.trf.xlu0
          %v324 = vpop.trf.xlu0
          %v325 = vpop.trf.xlu0
          %v326 = vpop.trf.xlu0
          %v327 = vpop.trf.xlu0
          %v328 = vpop.trf.xlu0
          %v329 = vpop.trf.xlu0
          %v330 = vpop.trf.xlu0
          %v331 = vpop.trf.xlu0
          %v332 = vpop.trf.xlu0
          %v333 = vpop.trf.xlu0
          %v334 = vpop.trf.xlu0
          %v335 = vpop.trf.xlu0
          %v336 = vpop.trf.xlu0
          %vm337 = vcmask 64512
          %338 = vst.msk [vmem:[#allocation2] sm:$0xff] %vm337, %v321
          %339 = vst.msk [vmem:[#allocation2 + $0x8] sm:$0xff] %vm337, %v322
          %341 = vrot.lane.b32.xlu0 %v302, 112
          %v342 = vpop.permute.xlu0 %341
          %vm344 = vcmask 130048
          %345 = vst.msk [vmem:[#allocation3] sm:$0xff] %vm344, %v342
          %346 = vrot.lane.b32.xlu0 %v302, 96
          %v347 = vpop.permute.xlu0 %346
          %349 = vst.msk [vmem:[#allocation4] sm:$0xff] %vm344, %v347
        $region44: #{tpu_custom_call.1} parent=31 // pred_fallthru
          _
        %s350 = smul.u32 %s26, 8
        %v351 = vld [vmem:[%s188] sm:$0xff]
        %v352 = vld [vmem:[#allocation3] sm:$0xff]
        %v353 = vld [vmem:[#allocation2] sm:$0xff]
        %v354 = vld [vmem:[#allocation2 + $0x8] sm:$0xff]
        %v355 = vld [vmem:[#allocation4] sm:$0xff]
        %vm356 = vcmask 130048
        %v358 = vsel %vm356, %v352, 0
        %360 = vmatprep.subr.mxu0 0.0
        %361 = vmatpush1.msra.mxu0 %v353
        %362 = vmatprep.subr.mxu0 0.0
        %363 = vmatpush1.msra.mxu0 %v354
        %364 = vmatprep.subr.mxu0 0.0
        %365 = vmatpush1.msra.mxu0 0.0
        %366 = vmatprep.subr.mxu0 0.0
        %367 = vmatpush1.msra.mxu0 0.0
        %368 = vmatprep.subr.mxu0 0.0
        %369 = vmatpush1.msra.mxu0 0.0
        %370 = vmatprep.subr.mxu0 0.0
        %371 = vmatpush1.msra.mxu0 0.0
        %372 = vmatprep.subr.mxu0 0.0
        %373 = vmatpush1.msra.mxu0 0.0
        %374 = vmatprep.subr.mxu0 0.0
        %375 = vmatpush1.msra.mxu0 0.0
        %376 = vmatprep.subr.mxu0 0.0
        %377 = vmatpush1.msra.mxu0 0.0
        %378 = vmatprep.subr.mxu0 0.0
        %379 = vmatpush1.msra.mxu0 0.0
        %380 = vmatprep.subr.mxu0 0.0
        %381 = vmatpush1.msra.mxu0 0.0
        %382 = vmatprep.subr.mxu0 0.0
        %383 = vmatpush1.msra.mxu0 0.0
        %384 = vmatprep.subr.mxu0 0.0
        %385 = vmatpush1.msra.mxu0 0.0
        %386 = vmatprep.subr.mxu0 0.0
        %387 = vmatpush1.msra.mxu0 0.0
        %388 = vmatprep.subr.mxu0 0.0
        %389 = vmatpush1.msra.mxu0 0.0
        %390 = vmatprep.subr.mxu0 0.0
        %391 = vmatpush1.msra.mxu0 0.0
        %392 = vmatprep.subr.mxu0 0.0
        %393 = vmatpush1.msra.mxu0 0.0
        %394 = vmatprep.subr.mxu0 0.0
        %395 = vmatpush1.msra.mxu0 0.0
        %396 = vmatprep.subr.mxu0 0.0
        %397 = vmatpush1.msra.mxu0 0.0
        %398 = vmatprep.subr.mxu0 0.0
        %399 = vmatpush1.msra.mxu0 0.0
        %400 = vmatprep.subr.mxu0 0.0
        %401 = vmatpush1.msra.mxu0 0.0
        %402 = vmatprep.subr.mxu0 0.0
        %403 = vmatpush1.msra.mxu0 0.0
        %404 = vmatprep.subr.mxu0 0.0
        %405 = vmatpush1.msra.mxu0 0.0
        %406 = vmatprep.subr.mxu0 0.0
        %407 = vmatpush1.msra.mxu0 0.0
        %408 = vmatprep.subr.mxu0 0.0
        %409 = vmatpush1.msra.mxu0 0.0
        %410 = vmatprep.subr.mxu0 0.0
        %411 = vmatpush1.msra.mxu0 0.0
        %412 = vmatprep.subr.mxu0 0.0
        %413 = vmatpush1.msra.mxu0 0.0
        %414 = vmatprep.subr.mxu0 0.0
        %415 = vmatpush1.msra.mxu0 0.0
        %416 = vmatprep.subr.mxu0 0.0
        %417 = vmatpush1.msra.mxu0 0.0
        %418 = vmatprep.subr.mxu0 0.0
        %419 = vmatpush1.msra.mxu0 0.0
        %420 = vmatprep.subr.mxu0 0.0
        %421 = vmatpush1.msra.mxu0 0.0
        %422 = vmatprep.subr.mxu0 0.0
        %423 = vmatpush1.msra.mxu0 0.0
        %424 = vmatprep.mubr.f32.mxu0 0.0
        %425 = vmatmul.mubr.f32.gmra.mrb[0].mxu0 %v358
        %v426 = vpop.f32.mrb[0].mxu0
        %v427 = vadd.f32 0.0, %v426
        %v428 = vpop.f32.mrb[0].mxu0
        %429 = vdwg.mxu0
        %v430 = vlaneseq
        %v431 = vshrl.u32 %v430, 7
        %v432 = vstv %s350
        %v433 = vadd.s32 %v432, %v431
        %v434 = vlaneseq
        %v435 = vand.u32 %v434, 127
        %vm436 = vcmp.gt.s32.totalorder %v435, %v433
        %v437 = vsel %vm436, -1e+09, %v427
        %vm438 = vcmask 64512
        %v439 = vsel %vm438, %v437, -inf
        %440 = vmax.xlane.f32.xlu0 %v439
        %v441 = vpop.xlane.xlu0 %440
        %v442 = vsub.f32 %v437, %v441
        %v443 = vmul.f32 %v442, 1.442695
        %v444 = vpow.pop %v443
        %v445 = vsel %vm438, %v444, 0.0
        %446 = vadd.xlane.f32.xlu0 %v445
        %v447 = vpop.xlane.xlu0 %446
        %v448 = vrcp.pop %v447
        %v449 = vmul.f32 %v444, %v448
        %v451 = vsel %vm438, %v449, 0
        %453 = vmatprep.subr.mxu0 0.0
        %454 = vmatpush1.msra.mxu0 %v355
        %455 = vmatprep.subr.mxu0 0.0
        %456 = vmatpush1.msra.mxu0 0.0
        %457 = vmatprep.subr.mxu0 0.0
        %458 = vmatpush1.msra.mxu0 0.0
        %459 = vmatprep.subr.mxu0 0.0
        %460 = vmatpush1.msra.mxu0 0.0
        %461 = vmatprep.subr.mxu0 0.0
        %462 = vmatpush1.msra.mxu0 0.0
        %463 = vmatprep.subr.mxu0 0.0
        %464 = vmatpush1.msra.mxu0 0.0
        %465 = vmatprep.subr.mxu0 0.0
        %466 = vmatpush1.msra.mxu0 0.0
        %467 = vmatprep.subr.mxu0 0.0
        %468 = vmatpush1.msra.mxu0 0.0
        %469 = vmatprep.subr.mxu0 0.0
        %470 = vmatpush1.msra.mxu0 0.0
        %471 = vmatprep.subr.mxu0 0.0
        %472 = vmatpush1.msra.mxu0 0.0
        %473 = vmatprep.subr.mxu0 0.0
        %474 = vmatpush1.msra.mxu0 0.0
        %475 = vmatprep.subr.mxu0 0.0
        %476 = vmatpush1.msra.mxu0 0.0
        %477 = vmatprep.subr.mxu0 0.0
        %478 = vmatpush1.msra.mxu0 0.0
        %479 = vmatprep.subr.mxu0 0.0
        %480 = vmatpush1.msra.mxu0 0.0
        %481 = vmatprep.subr.mxu0 0.0
        %482 = vmatpush1.msra.mxu0 0.0
        %483 = vmatprep.subr.mxu0 0.0
        %484 = vmatpush1.msra.mxu0 0.0
        %485 = vmatprep.subr.mxu0 0.0
        %486 = vmatpush1.msra.mxu0 0.0
        %487 = vmatprep.subr.mxu0 0.0
        %488 = vmatpush1.msra.mxu0 0.0
        %489 = vmatprep.subr.mxu0 0.0
        %490 = vmatpush1.msra.mxu0 0.0
        %491 = vmatprep.subr.mxu0 0.0
        %492 = vmatpush1.msra.mxu0 0.0
        %493 = vmatprep.subr.mxu0 0.0
        %494 = vmatpush1.msra.mxu0 0.0
        %495 = vmatprep.subr.mxu0 0.0
        %496 = vmatpush1.msra.mxu0 0.0
        %497 = vmatprep.subr.mxu0 0.0
        %498 = vmatpush1.msra.mxu0 0.0
        %499 = vmatprep.subr.mxu0 0.0
        %500 = vmatpush1.msra.mxu0 0.0
        %501 = vmatprep.subr.mxu0 0.0
        %502 = vmatpush1.msra.mxu0 0.0
        %503 = vmatprep.subr.mxu0 0.0
        %504 = vmatpush1.msra.mxu0 0.0
        %505 = vmatprep.subr.mxu0 0.0
        %506 = vmatpush1.msra.mxu0 0.0
        %507 = vmatprep.subr.mxu0 0.0
        %508 = vmatpush1.msra.mxu0 0.0
        %509 = vmatprep.subr.mxu0 0.0
        %510 = vmatpush1.msra.mxu0 0.0
        %511 = vmatprep.subr.mxu0 0.0
        %512 = vmatpush1.msra.mxu0 0.0
        %513 = vmatprep.subr.mxu0 0.0
        %514 = vmatpush1.msra.mxu0 0.0
        %515 = vmatprep.subr.mxu0 0.0
        %516 = vmatpush1.msra.mxu0 0.0
        %517 = vmatprep.mubr.f32.mxu0 0.0
        %518 = vmatmul.mubr.f32.gmra.mrb[0].mxu0 %v451
        %v519 = vpop.f32.mrb[0].mxu0
        %v520 = vadd.f32 0.0, %v519
        %v521 = vpop.f32.mrb[0].mxu0
        %522 = vdwg.mxu0
        %524 = vrot.lane.b32.xlu0 %v520, 32
        %v525 = vpop.permute.xlu0 %524
        %vm527 = vcmask 261120
        %v528 = vsel %vm527, %v351, %v525
        %vm529 = vcmask 392192
        %530 = vst.msk [vmem:[%s214] sm:$0xff] %vm529, %v528
        %s531 = sand.u32 %s111, 1
        %s532 = scalar_lea.sflag [#allocation7], %s531
        %s533 = sand.u32 %s111, 1
        %s534 = smul.addr %s533, 8
        %s535 = scalar_lea.vmem [#allocation10], %s534
        // Predicated region
        $region45: #{tpu_custom_call.1} parent=31 // pred_check
          %p536 = pneg %p121
        $region46: #{tpu_custom_call.1} parent=31 // pred_check_branch
          %538 = sbr.rel (%p536) target = $region48
        $region47: #{tpu_custom_call.1} parent=31 // pred_region
          %s540 = ssub.s32 128, 128
          %541 = vsyncadd %s532, %s540
          %s542 = sadd.s32 %s26, %s25
          %s543 = smul.addr %s542, 128
          %s544 = scalar_lea.hbm %s3, %s543
          %s546 = sshll.u32 %s535, 4
          %s547 = int_to_ptr.vmem [resolvable:$true] %s546
          %549 = dma.vmem_to_hbm [thread:$0]  %s547, 128, %s544, %s532
        $region48: #{tpu_custom_call.1} parent=31 // pred_fallthru
          _
      $region32: #{tpu_custom_call.1} parent=5 // pred_fallthru
        _
      %p550 = scmp.le.s32.totalorder 2, %s16
      // Predicated region
      $region49: #{tpu_custom_call.1} parent=5 // pred_check
        %p551 = pneg %p550
      $region50: #{tpu_custom_call.1} parent=5 // pred_check_branch
        %553 = sbr.rel (%p551) target = $region52
      $region51: #{tpu_custom_call.1} parent=5 // pred_region
        %s554 = ssub.s32 %s16, 2
        // Predicated region
        $region53: #{tpu_custom_call.1} parent=51 // pred_check
          %p555 = pneg %p127
        $region54: #{tpu_custom_call.1} parent=51 // pred_check_branch
          %557 = sbr.rel (%p555) target = $region56
        $region55: #{tpu_custom_call.1} parent=51 // pred_region
          %s558 = sand.u32 %s112, 1
          %s559 = scalar_lea.sflag [#allocation7], %s558
          %s560 = sand.u32 %s112, 1
          %s561 = smul.addr %s560, 8
          %s562 = scalar_lea.vmem [#allocation10], %s561
          %563 = dma.done %s559, 128
        $region56: #{tpu_custom_call.1} parent=51 // pred_fallthru
          _
      $region52: #{tpu_custom_call.1} parent=5 // pred_fallthru
        _
    $region6: #{tpu_custom_call.1} parent=1 // loop_footer
      %s20 = sadd.s32 1, %s16
    $region7: #{tpu_custom_call.1} parent=1 // loop_footer_branch
      %15 = sbr.rel target = $region3
    $region8: #{tpu_custom_call.1} parent=1 // loop_exit
      _
    %564 = vsyncpa [#allocation6], 1
    %s565 = scalar_lea.sflag [#allocation6], 1
    %566 = vsyncpa %s565, 1
    %567 = vsyncpa [#allocation9], 1
    %568 = vsyncpa [#allocation7], 1
    %s569 = scalar_lea.sflag [#allocation7], 1
    %570 = vsyncpa %s569, 1

</llo_original>
